<compile_context>
chip_gen: v7x
topology: tpu7x:2x2x1
jax: 0.10.0
libtpu: 0.0.40
codegen_flags: <defaults>
</compile_context>

<pallas_src>
import jax
import jax.numpy as jnp
from jax.experimental import pallas as pl
from jax.experimental.pallas import tpu as pltpu


def rbfnet_kernel(x_ref, locm2t_ref, csq_ref, nis_ref, w_ref, o_ref):
    # x_ref:      (TB, F)        f32   batch tile (single HBM pass)
    # locm2t_ref: (F, K)         bf16  (-2 * centroids)^T, resident
    # csq_ref:    (1, K)         f32   ||c||^2 (from bf16-rounded centroids)
    # nis_ref:    (1, K)         f32   -1/scale (exact, precomputed)
    # w_ref:      (K, OUT_PAD)   bf16  fc1.weight^T zero-padded lane-dense
    # o_ref:      (TB, OUT_PAD)  bf16

    # Cast once in-kernel; compute ||x||^2 from the *same rounded* values the
    # MXU will see so d2 >= 0 up to f32 accumulation error.
    x_bf = x_ref[...].astype(jnp.bfloat16)                         # (TB, F)
    x_r = x_bf.astype(jnp.float32)
    xsq = jnp.sum(x_r * x_r, axis=1, keepdims=True)                # (TB, 1) f32

    # MXU: x @ (-2 c)^T with f32 accumulation (dominant O(TB*K*F) work).
    xc = jnp.dot(x_bf, locm2t_ref[...],
                 preferred_element_type=jnp.float32)               # (TB, K) = -2 x.c

    # ||x - c||^2 = ||x||^2 + ||c||^2 - 2 x.c ; clamp tiny negatives.
    d2 = xsq + csq_ref[...] + xc
    dist = jnp.sqrt(jnp.maximum(d2, 0.0))

    # exp(-dist/scale) with an exact, precomputed -1/scale (EUP handles exp).
    # NOTE: with K=16 the (TB,K) sqrt/exp use 16/128 lanes; if TB grows a lot
    # the EUP slot (1/bundle) can become the per-step ceiling -- watch bundles.
    phi = jnp.exp(dist * nis_ref[...])                             # (TB, K) f32

    # Bias-free fc1 on the MXU in bf16 (phi in (0,1]), f32 accumulation.
    o_ref[...] = jnp.dot(phi.astype(jnp.bfloat16), w_ref[...],
                         preferred_element_type=jnp.float32).astype(o_ref.dtype)


def _round_up(v, m):
    return ((v + m - 1) // m) * m


def rbfnet_forward(x, centroids, scale, fc1_weight, *, batch_tile=1024):
    """RBFNet forward.

    x:          (B, ...)   input, flattened to (B, F) like torch's x.view(len(x), -1)
    centroids:  (K, ...)   RBF centroids, flattened to (K, F)
    scale:      (K,)       per-centroid scale
    fc1_weight: (OUT, K)   torch nn.Linear(K, OUT, bias=False).weight
    batch_tile: max batch tile (multiple of 8)
    """
    B = x.shape[0]
    x2d = x.reshape(B, -1).astype(jnp.float32)                     # (B, F) f32, 1 pass
    F = x2d.shape[1]
    K = centroids.shape[0]
    OUT = fc1_weight.shape[0]
    OUT_PAD = _round_up(OUT, 128)                                  # lane-dense output

    # --- layout plumbing on tiny (K, F)/(K,) operands, done once outside ---
    loc = centroids.reshape(K, -1).astype(jnp.float32)             # (K, F)
    loc_r = loc.astype(jnp.bfloat16).astype(jnp.float32)           # bf16-rounded loc
    loc_m2t = (-2.0 * loc_r).astype(jnp.bfloat16).T                # (F, K) bf16, -2 folded
    c_sq = jnp.sum(loc_r * loc_r, axis=1)[None, :]                 # (1, K) f32, consistent
    neg_inv_scale = (-1.0 / scale.astype(jnp.float32)).reshape(1, K)
    w_pad = jnp.zeros((K, OUT_PAD), jnp.bfloat16).at[:, :OUT].set(
        fc1_weight.T.astype(jnp.bfloat16))                          # (K, OUT_PAD) bf16

    # --- batch tiling ---
    # Small B: one full-dim block (always legal).  Large B: aim for >=4 grid
    # steps so v7x's 2 TensorCores each get >=2 pipelined steps; tile is a
    # multiple of 8 to satisfy the (8,128) sublane constraint.
    MIN_SPLIT_B = 256
    if B < MIN_SPLIT_B:
        TB = B
    else:
        steps_target = max(4, pl.cdiv(B, batch_tile))
        TB = min(batch_tile, _round_up(pl.cdiv(B, steps_target), 8))
    n_steps = pl.cdiv(B, TB)
    grid = (n_steps,)

    # x gets a 3rd buffer only when there are enough steps to pipeline.
    x_spec_kwargs = {}
    n_xbuf = 2
    if n_steps >= 3:
        x_spec_kwargs["pipeline_mode"] = pl.Buffered(3)
        n_xbuf = 3
    x_spec = pl.BlockSpec((TB, F), lambda i: (i, 0), **x_spec_kwargs)

    # Right-sized VMEM budget: x buffers + out buffers + residents + headroom.
    x_buf_bytes = n_xbuf * TB * F * 4
    out_buf_bytes = 2 * TB * OUT_PAD * 2
    resident_bytes = 2 * (F * K * 2 + K * OUT_PAD * 2) + 4 * 8 * 128 * 4
    vmem_limit = min(max(x_buf_bytes + out_buf_bytes + resident_bytes
                         + 4 * 1024 * 1024, 16 * 1024 * 1024),
                     48 * 1024 * 1024)

    out_pad = pl.pallas_call(
        rbfnet_kernel,
        out_shape=jax.ShapeDtypeStruct((B, OUT_PAD), jnp.bfloat16),
        grid_spec=pltpu.PrefetchScalarGridSpec(
            num_scalar_prefetch=0,
            grid=grid,
            in_specs=[
                x_spec,                                          # x tile (pipelined)
                pl.BlockSpec((F, K), lambda i: (0, 0)),          # (-2*loc)^T (resident)
                pl.BlockSpec((1, K), lambda i: (0, 0)),          # ||c||^2    (resident)
                pl.BlockSpec((1, K), lambda i: (0, 0)),          # -1/scale   (resident)
                pl.BlockSpec((K, OUT_PAD), lambda i: (0, 0)),    # fc1 W^T    (resident)
            ],
            out_specs=pl.BlockSpec((TB, OUT_PAD), lambda i: (i, 0)),
        ),
        compiler_params=pltpu.CompilerParams(
            dimension_semantics=("parallel",),    # shard batch tiles across TCs
            vmem_limit_bytes=vmem_limit,
        ),
    )(x2d, loc_m2t, c_sq, neg_inv_scale, w_pad)

    return out_pad[:, :OUT].astype(jnp.float32)


if __name__ == "__main__":
    key = jax.random.PRNGKey(0)
    k_x, k_c, k_w = jax.random.split(key, 3)

    # Small shapes consistent with the module: image-like input flattened by RBF.
    B, C, H, W = 2, 4, 16, 16          # x: (2, 4, 16, 16) -> F = 1024
    F_dim = C * H * W
    K = 16                              # number of centroids
    OUT = 10                            # out_features (RBFNet default)
    SCALE = 10.0                        # default scale

    x = jax.random.normal(k_x, (B, C, H, W), dtype=jnp.float32)
    centroids = jax.random.normal(k_c, (K, F_dim), dtype=jnp.float32)
    scale = SCALE * jnp.ones((K,), dtype=jnp.float32)
    # fc1: nn.Linear(K, OUT, bias=False) -> weight is (OUT, K).
    fc1_weight = jax.random.normal(k_w, (OUT, K), dtype=jnp.float32) * 0.1

    out = rbfnet_forward(x, centroids, scale, fc1_weight)
    out = jax.block_until_ready(out)

    # Pure-JAX f32 reference (matches the torch module).
    x2d = x.reshape(B, -1)
    dist = jnp.sqrt(jnp.sum((x2d[:, None, :] - centroids[None, :, :]) ** 2, axis=-1))
    phi = jnp.exp(-dist / scale[None, :])
    ref = phi @ fc1_weight.T

    assert out.shape == (B, OUT)
    # bf16 matmul inputs / bf16 output store -> modest tolerance vs f32 ref
    # (tighter than before: exact -1/scale, consistent bf16 rounding for d2).
    assert jnp.allclose(out, ref, rtol=3e-2, atol=1e-3), "mismatch vs reference"

    print("KERNEL_OK")
</pallas_src>

<mosaic_0001>
module attributes {stable_mosaic.version = 11 : i64} {
  func.func @rbfnet_kernel(%arg0: i32, %arg1: memref<2x1024xf32, #tpu.memory_space<vmem>>, %arg2: memref<1024x16xbf16, #tpu.memory_space<vmem>>, %arg3: memref<1x16xf32, #tpu.memory_space<vmem>>, %arg4: memref<1x16xf32, #tpu.memory_space<vmem>>, %arg5: memref<16x128xbf16, #tpu.memory_space<vmem>>, %arg6: memref<2x128xbf16, #tpu.memory_space<vmem>>) attributes {dimension_semantics = [#tpu.dimension_semantics<parallel>], iteration_bounds = array<i64: 1>, scalar_prefetch = 0 : i64, scratch_operands = 0 : i64, tpu.core_type = #tpu.core_type<tc>, window_params = [{transform_indices = @transform_0, window_bounds = array<i64: 2, 1024>}, {pipeline_mode = #tpu.pipeline_mode<synchronous>, transform_indices = @transform_1, window_bounds = array<i64: 1024, 16>}, {pipeline_mode = #tpu.pipeline_mode<synchronous>, transform_indices = @transform_2, window_bounds = array<i64: 1, 16>}, {pipeline_mode = #tpu.pipeline_mode<synchronous>, transform_indices = @transform_3, window_bounds = array<i64: 1, 16>}, {pipeline_mode = #tpu.pipeline_mode<synchronous>, transform_indices = @transform_4, window_bounds = array<i64: 16, 128>}, {transform_indices = @transform_5, window_bounds = array<i64: 2, 128>}]} {
    %c0 = arith.constant 0 : index
    %c0_0 = arith.constant 0 : index
    %0 = vector.load %arg1[%c0, %c0_0] : memref<2x1024xf32, #tpu.memory_space<vmem>>, vector<2x1024xf32>
    %1 = arith.truncf %0 : vector<2x1024xf32> to vector<2x1024xbf16>
    %2 = arith.extf %1 : vector<2x1024xbf16> to vector<2x1024xf32>
    %3 = arith.mulf %2, %2 : vector<2x1024xf32>
    %cst = arith.constant dense<0.000000e+00> : vector<2xf32>
    %4 = vector.multi_reduction <add>, %3, %cst [1] : vector<2x1024xf32> to vector<2xf32>
    %5 = vector.shape_cast %4 : vector<2xf32> to vector<2x1xf32>
    %c0_1 = arith.constant 0 : index
    %c0_2 = arith.constant 0 : index
    %6 = vector.load %arg2[%c0_1, %c0_2] : memref<1024x16xbf16, #tpu.memory_space<vmem>>, vector<1024x16xbf16>
    %cst_3 = arith.constant dense<0.000000e+00> : vector<2x16xf32>
    %7 = tpu.matmul %1, %6, %cst_3 {dimension_numbers = #tpu.dot_dimension_numbers<[1], [0], [0], [1], [0, 0, 1, 1], [], []>} : vector<2x1024xbf16>, vector<1024x16xbf16>, vector<2x16xf32> -> vector<2x16xf32>
    %c0_4 = arith.constant 0 : index
    %c0_5 = arith.constant 0 : index
    %8 = vector.load %arg3[%c0_4, %c0_5] : memref<1x16xf32, #tpu.memory_space<vmem>>, vector<1x16xf32>
    %9 = vector.broadcast %5 : vector<2x1xf32> to vector<2x16xf32>
    %10 = vector.broadcast %8 : vector<1x16xf32> to vector<2x16xf32>
    %11 = arith.addf %9, %10 : vector<2x16xf32>
    %12 = arith.addf %11, %7 : vector<2x16xf32>
    %cst_6 = arith.constant 0.000000e+00 : f32
    %13 = vector.broadcast %cst_6 : f32 to vector<2x16xf32>
    %14 = arith.maximumf %12, %13 : vector<2x16xf32>
    %15 = math.sqrt %14 : vector<2x16xf32>
    %c0_7 = arith.constant 0 : index
    %c0_8 = arith.constant 0 : index
    %16 = vector.load %arg4[%c0_7, %c0_8] : memref<1x16xf32, #tpu.memory_space<vmem>>, vector<1x16xf32>
    %17 = vector.broadcast %16 : vector<1x16xf32> to vector<2x16xf32>
    %18 = arith.mulf %15, %17 : vector<2x16xf32>
    %19 = math.exp %18 : vector<2x16xf32>
    %20 = arith.truncf %19 : vector<2x16xf32> to vector<2x16xbf16>
    %c0_9 = arith.constant 0 : index
    %c0_10 = arith.constant 0 : index
    %21 = vector.load %arg5[%c0_9, %c0_10] : memref<16x128xbf16, #tpu.memory_space<vmem>>, vector<16x128xbf16>
    %cst_11 = arith.constant dense<0.000000e+00> : vector<2x128xf32>
    %22 = tpu.matmul %20, %21, %cst_11 {dimension_numbers = #tpu.dot_dimension_numbers<[1], [0], [0], [1], [0, 0, 1, 1], [], []>} : vector<2x16xbf16>, vector<16x128xbf16>, vector<2x128xf32> -> vector<2x128xf32>
    %23 = arith.truncf %22 : vector<2x128xf32> to vector<2x128xbf16>
    %c0_12 = arith.constant 0 : index
    %c0_13 = arith.constant 0 : index
    %24 = vector.load %arg6[%c0_12, %c0_13] : memref<2x128xbf16, #tpu.memory_space<vmem>>, vector<2x128xbf16>
    tpu.vector_store %arg6[%c0_12, %c0_13], %23 {strides = array<i32>} : memref<2x128xbf16, #tpu.memory_space<vmem>>, vector<2x128xbf16>,
    return
  }
  func.func @transform_0(%arg0: i32) -> (i32, i32) {
    %c0_i32 = arith.constant 0 : i32
    %c0_i32_0 = arith.constant 0 : i32
    return %arg0, %c0_i32 : i32, i32
  }
  func.func @transform_1(%arg0: i32) -> (i32, i32) {
    %c0_i32 = arith.constant 0 : i32
    %c0_i32_0 = arith.constant 0 : i32
    %c0_i32_1 = arith.constant 0 : i32
    return %c0_i32, %c0_i32_0 : i32, i32
  }
  func.func @transform_2(%arg0: i32) -> (i32, i32) {
    %c0_i32 = arith.constant 0 : i32
    %c0_i32_0 = arith.constant 0 : i32
    %c0_i32_1 = arith.constant 0 : i32
    return %c0_i32, %c0_i32_0 : i32, i32
  }
  func.func @transform_3(%arg0: i32) -> (i32, i32) {
    %c0_i32 = arith.constant 0 : i32
    %c0_i32_0 = arith.constant 0 : i32
    %c0_i32_1 = arith.constant 0 : i32
    return %c0_i32, %c0_i32_0 : i32, i32
  }
  func.func @transform_4(%arg0: i32) -> (i32, i32) {
    %c0_i32 = arith.constant 0 : i32
    %c0_i32_0 = arith.constant 0 : i32
    %c0_i32_1 = arith.constant 0 : i32
    return %c0_i32, %c0_i32_0 : i32, i32
  }
  func.func @transform_5(%arg0: i32) -> (i32, i32) {
    %c0_i32 = arith.constant 0 : i32
    %c0_i32_0 = arith.constant 0 : i32
    return %arg0, %c0_i32 : i32, i32
  }
}

</mosaic_0001>

<llo_original>
// kernel: tpu_custom_call.1
$region0: #{tpu_custom_call.1}
  #allocation0 [shape = 'u32[]', space=smem, size = 0x4, offset = 0x4, fixed_abs, tag = 'smem constant byte address 0x4 - core index']
  #allocation1 [shape = 'u32[144,128]{1,0:T(1,128)}', space=vmem, size = 0x12000, scoped, tag = 'internal scratch']
  %s0 = inlined_call_operand.vmem [shape: f32[2,1024], index: 0, kind: input, shape index: {}]
  %s1 = inlined_call_operand.vmem [shape: bf16[1024,16], index: 1, kind: input, shape index: {}]
  %s2 = inlined_call_operand.vmem [shape: f32[1,16], index: 2, kind: input, shape index: {}]
  %s3 = inlined_call_operand.vmem [shape: f32[1,16], index: 3, kind: input, shape index: {}]
  %s4 = inlined_call_operand.vmem [shape: bf16[16,128], index: 4, kind: input, shape index: {}]
  %s5 = inlined_call_operand.hbm [shape: bf16[2,128], index: 5, kind: output, shape index: {}]
  %s6 = sld [smem:[#allocation0]]
  $region30: #{tpu_custom_call.1} parent=0
    _
  %s8 = ssub.s32 1, %s6
  %s9 = scalar_select 0, %s8, %s6
  $region1: #{tpu_custom_call.1} parent=0
    #allocation2 [shape = 'u8[512]{0}', space=vmem, size = 0x400, scoped, tag = 'output window, operand 0, single buffered']
    #allocation3 [shape = 's32[1]{0}', space=sflag, size = 0x4, scoped, tag = 'scoped memory for tpu_custom_call.1']
    %10 = vsyncpa [#allocation3], 0
    // Predicated region
    $region2: #{tpu_custom_call.1} parent=1 // pred_check
      _
    $region3: #{tpu_custom_call.1} parent=1 // pred_check_branch
      %12 = sbr.rel (0) target = $region5
    $region4: #{tpu_custom_call.1} parent=1 // pred_region
      _
    $region5: #{tpu_custom_call.1} parent=1 // pred_fallthru
      _
    // Predicated region
    $region6: #{tpu_custom_call.1} parent=1 // pred_check
      _
    $region7: #{tpu_custom_call.1} parent=1 // pred_check_branch
      %14 = sbr.rel (0) target = $region9
    $region8: #{tpu_custom_call.1} parent=1 // pred_region
      _
    $region9: #{tpu_custom_call.1} parent=1 // pred_fallthru
      _
    // Predicated region
    $region10: #{tpu_custom_call.1} parent=1 // pred_check
      _
    $region11: #{tpu_custom_call.1} parent=1 // pred_check_branch
      %16 = sbr.rel (0) target = $region13
    $region12: #{tpu_custom_call.1} parent=1 // pred_region
      _
    $region13: #{tpu_custom_call.1} parent=1 // pred_fallthru
      _
    // Predicated region
    $region14: #{tpu_custom_call.1} parent=1 // pred_check
      _
    $region15: #{tpu_custom_call.1} parent=1 // pred_check_branch
      %18 = sbr.rel (0) target = $region17
    $region16: #{tpu_custom_call.1} parent=1 // pred_region
      _
    $region17: #{tpu_custom_call.1} parent=1 // pred_fallthru
      _
    // Predicated region
    $region18: #{tpu_custom_call.1} parent=1 // pred_check
      _
    $region19: #{tpu_custom_call.1} parent=1 // pred_check_branch
      %20 = sbr.rel (0) target = $region21
    $region20: #{tpu_custom_call.1} parent=1 // pred_region
      _
    $region21: #{tpu_custom_call.1} parent=1 // pred_fallthru
      _
    %v22 = vld [vmem:[%s0] sm:$0xff]
    %v23 = vld [vmem:[%s0 + $0x8] sm:$0xff]
    %v26 = vcombine.high %v22, %v22
    %v28 = vunpack.c.l.s4 1983009808
    %v29 = vunpack.c.0.s8 %v28
    %v30 = vlaneseq
    %v31 = vshrl.u32 %v30, 7
    %v32 = vsub.s32 %v29, %v31
    %v33 = vrot.slane %v22, %v32
    %v35 = vunpack.c.l.s4 1983009808
    %v36 = vunpack.c.0.s8 %v35
    %v37 = vlaneseq
    %v38 = vshrl.u32 %v37, 7
    %v39 = vsub.s32 %v36, %v38
    %v40 = vrot.slane %v26, %v39
    %v41 = vcombine.high %v33, %v33
    %v42 = vcombine.high %v40, %v40
    %v43 = vcombine.high %v23, %v23
    %v45 = vunpack.c.l.s4 1983009808
    %v46 = vunpack.c.0.s8 %v45
    %v47 = vlaneseq
    %v48 = vshrl.u32 %v47, 7
    %v49 = vsub.s32 %v46, %v48
    %v50 = vrot.slane %v23, %v49
    %v52 = vunpack.c.l.s4 1983009808
    %v53 = vunpack.c.0.s8 %v52
    %v54 = vlaneseq
    %v55 = vshrl.u32 %v54, 7
    %v56 = vsub.s32 %v53, %v55
    %v57 = vrot.slane %v43, %v56
    %v58 = vcombine.high %v50, %v50
    %v59 = vcombine.high %v57, %v57
    %v68 = vpack.c.bf16 %v33, %v33
    %v69 = vpack.c.bf16 %v41, %v41
    %v70 = vpack.c.bf16 %v40, %v40
    %v71 = vpack.c.bf16 %v42, %v42
    %v72 = vpack.c.bf16 %v50, %v50
    %v73 = vpack.c.bf16 %v58, %v58
    %v74 = vpack.c.bf16 %v57, %v57
    %v75 = vpack.c.bf16 %v59, %v59
    %v76 = vunpack.c.l.bf16 %v68
    %v77 = vunpack.c.l.bf16 %v69
    %v78 = vunpack.c.l.bf16 %v70
    %v79 = vunpack.c.l.bf16 %v71
    %v80 = vunpack.c.l.bf16 %v72
    %v81 = vunpack.c.l.bf16 %v73
    %v82 = vunpack.c.l.bf16 %v74
    %v83 = vunpack.c.l.bf16 %v75
    %v84 = vmul.f32 %v76, %v76
    %v85 = vmul.f32 %v77, %v77
    %v86 = vmul.f32 %v78, %v78
    %v87 = vmul.f32 %v79, %v79
    %v88 = vmul.f32 %v80, %v80
    %v89 = vmul.f32 %v81, %v81
    %v90 = vmul.f32 %v82, %v82
    %v91 = vmul.f32 %v83, %v83
    %vm92 = vcmask 1041408
    %v93 = vsel %vm92, %v84, 0.0
    %v94 = vsel %vm92, %v85, 0.0
    %v95 = vadd.f32 %v93, %v94
    %v96 = vsel %vm92, %v86, 0.0
    %v97 = vadd.f32 %v95, %v96
    %v98 = vsel %vm92, %v87, 0.0
    %v99 = vadd.f32 %v97, %v98
    %v100 = vsel %vm92, %v88, 0.0
    %v101 = vadd.f32 %v99, %v100
    %v102 = vsel %vm92, %v89, 0.0
    %v103 = vadd.f32 %v101, %v102
    %v104 = vsel %vm92, %v90, 0.0
    %v105 = vadd.f32 %v103, %v104
    %v106 = vsel %vm92, %v91, 0.0
    %v107 = vadd.f32 %v105, %v106
    %108 = vadd.xlane.f32.xlu0 %v107
    %v109 = vpop.xlane.xlu0 %108
    %v110 = vld [vmem:[%s1] sm:$0xf]
    %v111 = vld [vmem:[%s1 + $0x4] sm:$0xf]
    %v112 = vld [vmem:[%s1 + $0x8] sm:$0xf]
    %v113 = vld [vmem:[%s1 + $0xc] sm:$0xf]
    %v114 = vld [vmem:[%s1 + $0x10] sm:$0xf]
    %v115 = vld [vmem:[%s1 + $0x14] sm:$0xf]
    %v116 = vld [vmem:[%s1 + $0x18] sm:$0xf]
    %v117 = vld [vmem:[%s1 + $0x1c] sm:$0xf]
    %v118 = vld [vmem:[%s1 + $0x20] sm:$0xf]
    %v119 = vld [vmem:[%s1 + $0x24] sm:$0xf]
    %v120 = vld [vmem:[%s1 + $0x28] sm:$0xf]
    %v121 = vld [vmem:[%s1 + $0x2c] sm:$0xf]
    %v122 = vld [vmem:[%s1 + $0x30] sm:$0xf]
    %v123 = vld [vmem:[%s1 + $0x34] sm:$0xf]
    %v124 = vld [vmem:[%s1 + $0x38] sm:$0xf]
    %v125 = vld [vmem:[%s1 + $0x3c] sm:$0xf]
    %v126 = vld [vmem:[%s1 + $0x40] sm:$0xf]
    %v127 = vld [vmem:[%s1 + $0x44] sm:$0xf]
    %v128 = vld [vmem:[%s1 + $0x48] sm:$0xf]
    %v129 = vld [vmem:[%s1 + $0x4c] sm:$0xf]
    %v130 = vld [vmem:[%s1 + $0x50] sm:$0xf]
    %v131 = vld [vmem:[%s1 + $0x54] sm:$0xf]
    %v132 = vld [vmem:[%s1 + $0x58] sm:$0xf]
    %v133 = vld [vmem:[%s1 + $0x5c] sm:$0xf]
    %v134 = vld [vmem:[%s1 + $0x60] sm:$0xf]
    %v135 = vld [vmem:[%s1 + $0x64] sm:$0xf]
    %v136 = vld [vmem:[%s1 + $0x68] sm:$0xf]
    %v137 = vld [vmem:[%s1 + $0x6c] sm:$0xf]
    %v138 = vld [vmem:[%s1 + $0x70] sm:$0xf]
    %v139 = vld [vmem:[%s1 + $0x74] sm:$0xf]
    %v140 = vld [vmem:[%s1 + $0x78] sm:$0xf]
    %v141 = vld [vmem:[%s1 + $0x7c] sm:$0xf]
    %v142 = vld [vmem:[%s1 + $0x80] sm:$0xf]
    %v143 = vld [vmem:[%s1 + $0x84] sm:$0xf]
    %v144 = vld [vmem:[%s1 + $0x88] sm:$0xf]
    %v145 = vld [vmem:[%s1 + $0x8c] sm:$0xf]
    %v146 = vld [vmem:[%s1 + $0x90] sm:$0xf]
    %v147 = vld [vmem:[%s1 + $0x94] sm:$0xf]
    %v148 = vld [vmem:[%s1 + $0x98] sm:$0xf]
    %v149 = vld [vmem:[%s1 + $0x9c] sm:$0xf]
    %v150 = vld [vmem:[%s1 + $0xa0] sm:$0xf]
    %v151 = vld [vmem:[%s1 + $0xa4] sm:$0xf]
    %v152 = vld [vmem:[%s1 + $0xa8] sm:$0xf]
    %v153 = vld [vmem:[%s1 + $0xac] sm:$0xf]
    %v154 = vld [vmem:[%s1 + $0xb0] sm:$0xf]
    %v155 = vld [vmem:[%s1 + $0xb4] sm:$0xf]
    %v156 = vld [vmem:[%s1 + $0xb8] sm:$0xf]
    %v157 = vld [vmem:[%s1 + $0xbc] sm:$0xf]
    %v158 = vld [vmem:[%s1 + $0xc0] sm:$0xf]
    %v159 = vld [vmem:[%s1 + $0xc4] sm:$0xf]
    %v160 = vld [vmem:[%s1 + $0xc8] sm:$0xf]
    %v161 = vld [vmem:[%s1 + $0xcc] sm:$0xf]
    %v162 = vld [vmem:[%s1 + $0xd0] sm:$0xf]
    %v163 = vld [vmem:[%s1 + $0xd4] sm:$0xf]
    %v164 = vld [vmem:[%s1 + $0xd8] sm:$0xf]
    %v165 = vld [vmem:[%s1 + $0xdc] sm:$0xf]
    %v166 = vld [vmem:[%s1 + $0xe0] sm:$0xf]
    %v167 = vld [vmem:[%s1 + $0xe4] sm:$0xf]
    %v168 = vld [vmem:[%s1 + $0xe8] sm:$0xf]
    %v169 = vld [vmem:[%s1 + $0xec] sm:$0xf]
    %v170 = vld [vmem:[%s1 + $0xf0] sm:$0xf]
    %v171 = vld [vmem:[%s1 + $0xf4] sm:$0xf]
    %v172 = vld [vmem:[%s1 + $0xf8] sm:$0xf]
    %v173 = vld [vmem:[%s1 + $0xfc] sm:$0xf]
    %v174 = vld [vmem:[%s1 + $0x100] sm:$0xf]
    %v175 = vld [vmem:[%s1 + $0x104] sm:$0xf]
    %v176 = vld [vmem:[%s1 + $0x108] sm:$0xf]
    %v177 = vld [vmem:[%s1 + $0x10c] sm:$0xf]
    %v178 = vld [vmem:[%s1 + $0x110] sm:$0xf]
    %v179 = vld [vmem:[%s1 + $0x114] sm:$0xf]
    %v180 = vld [vmem:[%s1 + $0x118] sm:$0xf]
    %v181 = vld [vmem:[%s1 + $0x11c] sm:$0xf]
    %v182 = vld [vmem:[%s1 + $0x120] sm:$0xf]
    %v183 = vld [vmem:[%s1 + $0x124] sm:$0xf]
    %v184 = vld [vmem:[%s1 + $0x128] sm:$0xf]
    %v185 = vld [vmem:[%s1 + $0x12c] sm:$0xf]
    %v186 = vld [vmem:[%s1 + $0x130] sm:$0xf]
    %v187 = vld [vmem:[%s1 + $0x134] sm:$0xf]
    %v188 = vld [vmem:[%s1 + $0x138] sm:$0xf]
    %v189 = vld [vmem:[%s1 + $0x13c] sm:$0xf]
    %v190 = vld [vmem:[%s1 + $0x140] sm:$0xf]
    %v191 = vld [vmem:[%s1 + $0x144] sm:$0xf]
    %v192 = vld [vmem:[%s1 + $0x148] sm:$0xf]
    %v193 = vld [vmem:[%s1 + $0x14c] sm:$0xf]
    %v194 = vld [vmem:[%s1 + $0x150] sm:$0xf]
    %v195 = vld [vmem:[%s1 + $0x154] sm:$0xf]
    %v196 = vld [vmem:[%s1 + $0x158] sm:$0xf]
    %v197 = vld [vmem:[%s1 + $0x15c] sm:$0xf]
    %v198 = vld [vmem:[%s1 + $0x160] sm:$0xf]
    %v199 = vld [vmem:[%s1 + $0x164] sm:$0xf]
    %v200 = vld [vmem:[%s1 + $0x168] sm:$0xf]
    %v201 = vld [vmem:[%s1 + $0x16c] sm:$0xf]
    %v202 = vld [vmem:[%s1 + $0x170] sm:$0xf]
    %v203 = vld [vmem:[%s1 + $0x174] sm:$0xf]
    %v204 = vld [vmem:[%s1 + $0x178] sm:$0xf]
    %v205 = vld [vmem:[%s1 + $0x17c] sm:$0xf]
    %v206 = vld [vmem:[%s1 + $0x180] sm:$0xf]
    %v207 = vld [vmem:[%s1 + $0x184] sm:$0xf]
    %v208 = vld [vmem:[%s1 + $0x188] sm:$0xf]
    %v209 = vld [vmem:[%s1 + $0x18c] sm:$0xf]
    %v210 = vld [vmem:[%s1 + $0x190] sm:$0xf]
    %v211 = vld [vmem:[%s1 + $0x194] sm:$0xf]
    %v212 = vld [vmem:[%s1 + $0x198] sm:$0xf]
    %v213 = vld [vmem:[%s1 + $0x19c] sm:$0xf]
    %v214 = vld [vmem:[%s1 + $0x1a0] sm:$0xf]
    %v215 = vld [vmem:[%s1 + $0x1a4] sm:$0xf]
    %v216 = vld [vmem:[%s1 + $0x1a8] sm:$0xf]
    %v217 = vld [vmem:[%s1 + $0x1ac] sm:$0xf]
    %v218 = vld [vmem:[%s1 + $0x1b0] sm:$0xf]
    %v219 = vld [vmem:[%s1 + $0x1b4] sm:$0xf]
    %v220 = vld [vmem:[%s1 + $0x1b8] sm:$0xf]
    %v221 = vld [vmem:[%s1 + $0x1bc] sm:$0xf]
    %v222 = vld [vmem:[%s1 + $0x1c0] sm:$0xf]
    %v223 = vld [vmem:[%s1 + $0x1c4] sm:$0xf]
    %v224 = vld [vmem:[%s1 + $0x1c8] sm:$0xf]
    %v225 = vld [vmem:[%s1 + $0x1cc] sm:$0xf]
    %v226 = vld [vmem:[%s1 + $0x1d0] sm:$0xf]
    %v227 = vld [vmem:[%s1 + $0x1d4] sm:$0xf]
    %v228 = vld [vmem:[%s1 + $0x1d8] sm:$0xf]
    %v229 = vld [vmem:[%s1 + $0x1dc] sm:$0xf]
    %v230 = vld [vmem:[%s1 + $0x1e0] sm:$0xf]
    %v231 = vld [vmem:[%s1 + $0x1e4] sm:$0xf]
    %v232 = vld [vmem:[%s1 + $0x1e8] sm:$0xf]
    %v233 = vld [vmem:[%s1 + $0x1ec] sm:$0xf]
    %v234 = vld [vmem:[%s1 + $0x1f0] sm:$0xf]
    %v235 = vld [vmem:[%s1 + $0x1f4] sm:$0xf]
    %v236 = vld [vmem:[%s1 + $0x1f8] sm:$0xf]
    %v237 = vld [vmem:[%s1 + $0x1fc] sm:$0xf]
    %v366 = vunpack.c.l.b16 %v110
    %v367 = vunpack.c.l.b16 %v111
    %v368 = vunpack.c.l.b16 %v112
    %v369 = vunpack.c.l.b16 %v113
    %v370 = vunpack.c.l.b16 %v114
    %v371 = vunpack.c.l.b16 %v115
    %v372 = vunpack.c.l.b16 %v116
    %v373 = vunpack.c.l.b16 %v117
    %v374 = vunpack.c.l.b16 %v118
    %v375 = vunpack.c.l.b16 %v119
    %v376 = vunpack.c.l.b16 %v120
    %v377 = vunpack.c.l.b16 %v121
    %v378 = vunpack.c.l.b16 %v122
    %v379 = vunpack.c.l.b16 %v123
    %v380 = vunpack.c.l.b16 %v124
    %v381 = vunpack.c.l.b16 %v125
    %v382 = vunpack.c.l.b16 %v126
    %v383 = vunpack.c.l.b16 %v127
    %v384 = vunpack.c.l.b16 %v128
    %v385 = vunpack.c.l.b16 %v129
    %v386 = vunpack.c.l.b16 %v130
    %v387 = vunpack.c.l.b16 %v131
    %v388 = vunpack.c.l.b16 %v132
    %v389 = vunpack.c.l.b16 %v133
    %v390 = vunpack.c.l.b16 %v134
    %v391 = vunpack.c.l.b16 %v135
    %v392 = vunpack.c.l.b16 %v136
    %v393 = vunpack.c.l.b16 %v137
    %v394 = vunpack.c.l.b16 %v138
    %v395 = vunpack.c.l.b16 %v139
    %v396 = vunpack.c.l.b16 %v140
    %v397 = vunpack.c.l.b16 %v141
    %v398 = vunpack.c.l.b16 %v142
    %v399 = vunpack.c.l.b16 %v143
    %v400 = vunpack.c.l.b16 %v144
    %v401 = vunpack.c.l.b16 %v145
    %v402 = vunpack.c.l.b16 %v146
    %v403 = vunpack.c.l.b16 %v147
    %v404 = vunpack.c.l.b16 %v148
    %v405 = vunpack.c.l.b16 %v149
    %v406 = vunpack.c.l.b16 %v150
    %v407 = vunpack.c.l.b16 %v151
    %v408 = vunpack.c.l.b16 %v152
    %v409 = vunpack.c.l.b16 %v153
    %v410 = vunpack.c.l.b16 %v154
    %v411 = vunpack.c.l.b16 %v155
    %v412 = vunpack.c.l.b16 %v156
    %v413 = vunpack.c.l.b16 %v157
    %v414 = vunpack.c.l.b16 %v158
    %v415 = vunpack.c.l.b16 %v159
    %v416 = vunpack.c.l.b16 %v160
    %v417 = vunpack.c.l.b16 %v161
    %v418 = vunpack.c.l.b16 %v162
    %v419 = vunpack.c.l.b16 %v163
    %v420 = vunpack.c.l.b16 %v164
    %v421 = vunpack.c.l.b16 %v165
    %v422 = vunpack.c.l.b16 %v166
    %v423 = vunpack.c.l.b16 %v167
    %v424 = vunpack.c.l.b16 %v168
    %v425 = vunpack.c.l.b16 %v169
    %v426 = vunpack.c.l.b16 %v170
    %v427 = vunpack.c.l.b16 %v171
    %v428 = vunpack.c.l.b16 %v172
    %v429 = vunpack.c.l.b16 %v173
    %v430 = vunpack.c.l.b16 %v174
    %v431 = vunpack.c.l.b16 %v175
    %v432 = vunpack.c.l.b16 %v176
    %v433 = vunpack.c.l.b16 %v177
    %v434 = vunpack.c.l.b16 %v178
    %v435 = vunpack.c.l.b16 %v179
    %v436 = vunpack.c.l.b16 %v180
    %v437 = vunpack.c.l.b16 %v181
    %v438 = vunpack.c.l.b16 %v182
    %v439 = vunpack.c.l.b16 %v183
    %v440 = vunpack.c.l.b16 %v184
    %v441 = vunpack.c.l.b16 %v185
    %v442 = vunpack.c.l.b16 %v186
    %v443 = vunpack.c.l.b16 %v187
    %v444 = vunpack.c.l.b16 %v188
    %v445 = vunpack.c.l.b16 %v189
    %v446 = vunpack.c.l.b16 %v190
    %v447 = vunpack.c.l.b16 %v191
    %v448 = vunpack.c.l.b16 %v192
    %v449 = vunpack.c.l.b16 %v193
    %v450 = vunpack.c.l.b16 %v194
    %v451 = vunpack.c.l.b16 %v195
    %v452 = vunpack.c.l.b16 %v196
    %v453 = vunpack.c.l.b16 %v197
    %v454 = vunpack.c.l.b16 %v198
    %v455 = vunpack.c.l.b16 %v199
    %v456 = vunpack.c.l.b16 %v200
    %v457 = vunpack.c.l.b16 %v201
    %v458 = vunpack.c.l.b16 %v202
    %v459 = vunpack.c.l.b16 %v203
    %v460 = vunpack.c.l.b16 %v204
    %v461 = vunpack.c.l.b16 %v205
    %v462 = vunpack.c.l.b16 %v206
    %v463 = vunpack.c.l.b16 %v207
    %v464 = vunpack.c.l.b16 %v208
    %v465 = vunpack.c.l.b16 %v209
    %v466 = vunpack.c.l.b16 %v210
    %v467 = vunpack.c.l.b16 %v211
    %v468 = vunpack.c.l.b16 %v212
    %v469 = vunpack.c.l.b16 %v213
    %v470 = vunpack.c.l.b16 %v214
    %v471 = vunpack.c.l.b16 %v215
    %v472 = vunpack.c.l.b16 %v216
    %v473 = vunpack.c.l.b16 %v217
    %v474 = vunpack.c.l.b16 %v218
    %v475 = vunpack.c.l.b16 %v219
    %v476 = vunpack.c.l.b16 %v220
    %v477 = vunpack.c.l.b16 %v221
    %v478 = vunpack.c.l.b16 %v222
    %v479 = vunpack.c.l.b16 %v223
    %v480 = vunpack.c.l.b16 %v224
    %v481 = vunpack.c.l.b16 %v225
    %v482 = vunpack.c.l.b16 %v226
    %v483 = vunpack.c.l.b16 %v227
    %v484 = vunpack.c.l.b16 %v228
    %v485 = vunpack.c.l.b16 %v229
    %v486 = vunpack.c.l.b16 %v230
    %v487 = vunpack.c.l.b16 %v231
    %v488 = vunpack.c.l.b16 %v232
    %v489 = vunpack.c.l.b16 %v233
    %v490 = vunpack.c.l.b16 %v234
    %v491 = vunpack.c.l.b16 %v235
    %v492 = vunpack.c.l.b16 %v236
    %v493 = vunpack.c.l.b16 %v237
    %v494 = vpack.c.b16 %v367, %v366
    %v495 = vpack.c.b16 %v369, %v368
    %v496 = vpack.c.b16 %v371, %v370
    %v497 = vpack.c.b16 %v373, %v372
    %v498 = vpack.c.b16 %v375, %v374
    %v499 = vpack.c.b16 %v377, %v376
    %v500 = vpack.c.b16 %v379, %v378
    %v501 = vpack.c.b16 %v381, %v380
    %v502 = vpack.c.b16 %v383, %v382
    %v503 = vpack.c.b16 %v385, %v384
    %v504 = vpack.c.b16 %v387, %v386
    %v505 = vpack.c.b16 %v389, %v388
    %v506 = vpack.c.b16 %v391, %v390
    %v507 = vpack.c.b16 %v393, %v392
    %v508 = vpack.c.b16 %v395, %v394
    %v509 = vpack.c.b16 %v397, %v396
    %v510 = vpack.c.b16 %v399, %v398
    %v511 = vpack.c.b16 %v401, %v400
    %v512 = vpack.c.b16 %v403, %v402
    %v513 = vpack.c.b16 %v405, %v404
    %v514 = vpack.c.b16 %v407, %v406
    %v515 = vpack.c.b16 %v409, %v408
    %v516 = vpack.c.b16 %v411, %v410
    %v517 = vpack.c.b16 %v413, %v412
    %v518 = vpack.c.b16 %v415, %v414
    %v519 = vpack.c.b16 %v417, %v416
    %v520 = vpack.c.b16 %v419, %v418
    %v521 = vpack.c.b16 %v421, %v420
    %v522 = vpack.c.b16 %v423, %v422
    %v523 = vpack.c.b16 %v425, %v424
    %v524 = vpack.c.b16 %v427, %v426
    %v525 = vpack.c.b16 %v429, %v428
    %v526 = vpack.c.b16 %v431, %v430
    %v527 = vpack.c.b16 %v433, %v432
    %v528 = vpack.c.b16 %v435, %v434
    %v529 = vpack.c.b16 %v437, %v436
    %v530 = vpack.c.b16 %v439, %v438
    %v531 = vpack.c.b16 %v441, %v440
    %v532 = vpack.c.b16 %v443, %v442
    %v533 = vpack.c.b16 %v445, %v444
    %v534 = vpack.c.b16 %v447, %v446
    %v535 = vpack.c.b16 %v449, %v448
    %v536 = vpack.c.b16 %v451, %v450
    %v537 = vpack.c.b16 %v453, %v452
    %v538 = vpack.c.b16 %v455, %v454
    %v539 = vpack.c.b16 %v457, %v456
    %v540 = vpack.c.b16 %v459, %v458
    %v541 = vpack.c.b16 %v461, %v460
    %v542 = vpack.c.b16 %v463, %v462
    %v543 = vpack.c.b16 %v465, %v464
    %v544 = vpack.c.b16 %v467, %v466
    %v545 = vpack.c.b16 %v469, %v468
    %v546 = vpack.c.b16 %v471, %v470
    %v547 = vpack.c.b16 %v473, %v472
    %v548 = vpack.c.b16 %v475, %v474
    %v549 = vpack.c.b16 %v477, %v476
    %v550 = vpack.c.b16 %v479, %v478
    %v551 = vpack.c.b16 %v481, %v480
    %v552 = vpack.c.b16 %v483, %v482
    %v553 = vpack.c.b16 %v485, %v484
    %v554 = vpack.c.b16 %v487, %v486
    %v555 = vpack.c.b16 %v489, %v488
    %v556 = vpack.c.b16 %v491, %v490
    %v557 = vpack.c.b16 %v493, %v492
    %622 = vmatprep.subr.bf16.mxu0 0
    %623 = vmatpush1.bf16.msra.mxu0 %v494
    %624 = vmatprep.subr.bf16.mxu0 0
    %625 = vmatpush1.bf16.msra.mxu0 %v495
    %626 = vmatprep.subr.bf16.mxu0 0
    %627 = vmatpush1.bf16.msra.mxu0 %v496
    %628 = vmatprep.subr.bf16.mxu0 0
    %629 = vmatpush1.bf16.msra.mxu0 %v497
    %630 = vmatprep.subr.bf16.mxu0 0
    %631 = vmatpush1.bf16.msra.mxu0 %v498
    %632 = vmatprep.subr.bf16.mxu0 0
    %633 = vmatpush1.bf16.msra.mxu0 %v499
    %634 = vmatprep.subr.bf16.mxu0 0
    %635 = vmatpush1.bf16.msra.mxu0 %v500
    %636 = vmatprep.subr.bf16.mxu0 0
    %637 = vmatpush1.bf16.msra.mxu0 %v501
    %638 = vmatprep.subr.bf16.mxu0 0
    %639 = vmatpush1.bf16.msra.mxu0 %v502
    %640 = vmatprep.subr.bf16.mxu0 0
    %641 = vmatpush1.bf16.msra.mxu0 %v503
    %642 = vmatprep.subr.bf16.mxu0 0
    %643 = vmatpush1.bf16.msra.mxu0 %v504
    %644 = vmatprep.subr.bf16.mxu0 0
    %645 = vmatpush1.bf16.msra.mxu0 %v505
    %646 = vmatprep.subr.bf16.mxu0 0
    %647 = vmatpush1.bf16.msra.mxu0 %v506
    %648 = vmatprep.subr.bf16.mxu0 0
    %649 = vmatpush1.bf16.msra.mxu0 %v507
    %650 = vmatprep.subr.bf16.mxu0 0
    %651 = vmatpush1.bf16.msra.mxu0 %v508
    %652 = vmatprep.subr.bf16.mxu0 0
    %653 = vmatpush1.bf16.msra.mxu0 %v509
    %654 = vmatprep.mubr.bf16.mxu0 %v69
    %655 = vmatmul.mubr.bf16.gmra.mrb[0].mxu0 %v68
    %v656 = vpop.f32.mrb[0].mxu0
    %v657 = vadd.f32 0.0, %v656
    %v658 = vpop.f32.mrb[0].mxu0
    %v659 = vpop.f32.mrb[0].mxu0
    %v660 = vpop.f32.mrb[0].mxu0
    %661 = vdwg.mxu0
    %662 = vmatprep.subr.bf16.mxu0 0
    %663 = vmatpush1.bf16.msra.mxu0 %v510
    %664 = vmatprep.subr.bf16.mxu0 0
    %665 = vmatpush1.bf16.msra.mxu0 %v511
    %666 = vmatprep.subr.bf16.mxu0 0
    %667 = vmatpush1.bf16.msra.mxu0 %v512
    %668 = vmatprep.subr.bf16.mxu0 0
    %669 = vmatpush1.bf16.msra.mxu0 %v513
    %670 = vmatprep.subr.bf16.mxu0 0
    %671 = vmatpush1.bf16.msra.mxu0 %v514
    %672 = vmatprep.subr.bf16.mxu0 0
    %673 = vmatpush1.bf16.msra.mxu0 %v515
    %674 = vmatprep.subr.bf16.mxu0 0
    %675 = vmatpush1.bf16.msra.mxu0 %v516
    %676 = vmatprep.subr.bf16.mxu0 0
    %677 = vmatpush1.bf16.msra.mxu0 %v517
    %678 = vmatprep.subr.bf16.mxu0 0
    %679 = vmatpush1.bf16.msra.mxu0 %v518
    %680 = vmatprep.subr.bf16.mxu0 0
    %681 = vmatpush1.bf16.msra.mxu0 %v519
    %682 = vmatprep.subr.bf16.mxu0 0
    %683 = vmatpush1.bf16.msra.mxu0 %v520
    %684 = vmatprep.subr.bf16.mxu0 0
    %685 = vmatpush1.bf16.msra.mxu0 %v521
    %686 = vmatprep.subr.bf16.mxu0 0
    %687 = vmatpush1.bf16.msra.mxu0 %v522
    %688 = vmatprep.subr.bf16.mxu0 0
    %689 = vmatpush1.bf16.msra.mxu0 %v523
    %690 = vmatprep.subr.bf16.mxu0 0
    %691 = vmatpush1.bf16.msra.mxu0 %v524
    %692 = vmatprep.subr.bf16.mxu0 0
    %693 = vmatpush1.bf16.msra.mxu0 %v525
    %694 = vmatprep.mubr.bf16.mxu0 %v71
    %695 = vmatmul.mubr.bf16.gmra.mrb[0].mxu0 %v70
    %v696 = vpop.f32.mrb[0].mxu0
    %v697 = vadd.f32 %v657, %v696
    %v698 = vpop.f32.mrb[0].mxu0
    %v699 = vpop.f32.mrb[0].mxu0
    %v700 = vpop.f32.mrb[0].mxu0
    %701 = vdwg.mxu0
    %702 = vmatprep.subr.bf16.mxu0 0
    %703 = vmatpush1.bf16.msra.mxu0 %v526
    %704 = vmatprep.subr.bf16.mxu0 0
    %705 = vmatpush1.bf16.msra.mxu0 %v527
    %706 = vmatprep.subr.bf16.mxu0 0
    %707 = vmatpush1.bf16.msra.mxu0 %v528
    %708 = vmatprep.subr.bf16.mxu0 0
    %709 = vmatpush1.bf16.msra.mxu0 %v529
    %710 = vmatprep.subr.bf16.mxu0 0
    %711 = vmatpush1.bf16.msra.mxu0 %v530
    %712 = vmatprep.subr.bf16.mxu0 0
    %713 = vmatpush1.bf16.msra.mxu0 %v531
    %714 = vmatprep.subr.bf16.mxu0 0
    %715 = vmatpush1.bf16.msra.mxu0 %v532
    %716 = vmatprep.subr.bf16.mxu0 0
    %717 = vmatpush1.bf16.msra.mxu0 %v533
    %718 = vmatprep.subr.bf16.mxu0 0
    %719 = vmatpush1.bf16.msra.mxu0 %v534
    %720 = vmatprep.subr.bf16.mxu0 0
    %721 = vmatpush1.bf16.msra.mxu0 %v535
    %722 = vmatprep.subr.bf16.mxu0 0
    %723 = vmatpush1.bf16.msra.mxu0 %v536
    %724 = vmatprep.subr.bf16.mxu0 0
    %725 = vmatpush1.bf16.msra.mxu0 %v537
    %726 = vmatprep.subr.bf16.mxu0 0
    %727 = vmatpush1.bf16.msra.mxu0 %v538
    %728 = vmatprep.subr.bf16.mxu0 0
    %729 = vmatpush1.bf16.msra.mxu0 %v539
    %730 = vmatprep.subr.bf16.mxu0 0
    %731 = vmatpush1.bf16.msra.mxu0 %v540
    %732 = vmatprep.subr.bf16.mxu0 0
    %733 = vmatpush1.bf16.msra.mxu0 %v541
    %734 = vmatprep.mubr.bf16.mxu0 %v73
    %735 = vmatmul.mubr.bf16.gmra.mrb[0].mxu0 %v72
    %v736 = vpop.f32.mrb[0].mxu0
    %v737 = vadd.f32 %v697, %v736
    %v738 = vpop.f32.mrb[0].mxu0
    %v739 = vpop.f32.mrb[0].mxu0
    %v740 = vpop.f32.mrb[0].mxu0
    %741 = vdwg.mxu0
    %742 = vmatprep.subr.bf16.mxu0 0
    %743 = vmatpush1.bf16.msra.mxu0 %v542
    %744 = vmatprep.subr.bf16.mxu0 0
    %745 = vmatpush1.bf16.msra.mxu0 %v543
    %746 = vmatprep.subr.bf16.mxu0 0
    %747 = vmatpush1.bf16.msra.mxu0 %v544
    %748 = vmatprep.subr.bf16.mxu0 0
    %749 = vmatpush1.bf16.msra.mxu0 %v545
    %750 = vmatprep.subr.bf16.mxu0 0
    %751 = vmatpush1.bf16.msra.mxu0 %v546
    %752 = vmatprep.subr.bf16.mxu0 0
    %753 = vmatpush1.bf16.msra.mxu0 %v547
    %754 = vmatprep.subr.bf16.mxu0 0
    %755 = vmatpush1.bf16.msra.mxu0 %v548
    %756 = vmatprep.subr.bf16.mxu0 0
    %757 = vmatpush1.bf16.msra.mxu0 %v549
    %758 = vmatprep.subr.bf16.mxu0 0
    %759 = vmatpush1.bf16.msra.mxu0 %v550
    %760 = vmatprep.subr.bf16.mxu0 0
    %761 = vmatpush1.bf16.msra.mxu0 %v551
    %762 = vmatprep.subr.bf16.mxu0 0
    %763 = vmatpush1.bf16.msra.mxu0 %v552
    %764 = vmatprep.subr.bf16.mxu0 0
    %765 = vmatpush1.bf16.msra.mxu0 %v553
    %766 = vmatprep.subr.bf16.mxu0 0
    %767 = vmatpush1.bf16.msra.mxu0 %v554
    %768 = vmatprep.subr.bf16.mxu0 0
    %769 = vmatpush1.bf16.msra.mxu0 %v555
    %770 = vmatprep.subr.bf16.mxu0 0
    %771 = vmatpush1.bf16.msra.mxu0 %v556
    %772 = vmatprep.subr.bf16.mxu0 0
    %773 = vmatpush1.bf16.msra.mxu0 %v557
    %774 = vmatprep.mubr.bf16.mxu0 %v75
    %775 = vmatmul.mubr.bf16.gmra.mrb[0].mxu0 %v74
    %v776 = vpop.f32.mrb[0].mxu0
    %v777 = vadd.f32 %v737, %v776
    %v778 = vpop.f32.mrb[0].mxu0
    %v779 = vpop.f32.mrb[0].mxu0
    %v780 = vpop.f32.mrb[0].mxu0
    %781 = vdwg.mxu0
    %v782 = vld [vmem:[%s2] sm:$0x1]
    %v784 = vlaneseq
    %v785 = vshrl.u32 %v784, 7
    %v786 = vsub.s32 0, %v785
    %v787 = vrot.slane %v782, %v786
    %v789 = vadd.f32 %v109, %v787
    %v790 = vadd.f32 %v789, %v777
    %v791 = vmax.f32 %v790, 0.0
    %v792 = vrsqrt.pop %v791
    %v793 = vmul.f32 %v791, %v792
    %vm794 = vcmp.eq.f32.partialorder %v791, inf
    %v795 = vsel %vm794, %v791, %v793
    %vm796 = vcmp.eq.f32.partialorder %v791, 0.0
    %v797 = vand.u32 %v791, 2147483648
    %v798 = vsel %vm796, %v797, %v795
    %v799 = vld [vmem:[%s3] sm:$0x1]
    %v801 = vlaneseq
    %v802 = vshrl.u32 %v801, 7
    %v803 = vsub.s32 0, %v802
    %v804 = vrot.slane %v799, %v803
    %v806 = vmul.f32 %v798, %v804
    %v807 = vmul.f32 %v806, 1.442695
    %v808 = vpow.pop %v807
    %v809 = vpack.c.bf16 %v808, %v808
    %v810 = vld [vmem:[%s4] sm:$0xf]
    %v811 = vld [vmem:[%s4 + $0x4] sm:$0xf]
    %v814 = vunpack.c.l.b16 %v810
    %v815 = vunpack.c.l.b16 %v811
    %v816 = vpack.c.b16 %v815, %v814
    %vm818 = vcmask 130048
    %v820 = vsel %vm818, %v809, 0
    %822 = vmatprep.subr.bf16.mxu0 0
    %823 = vmatpush1.bf16.msra.mxu0 %v816
    %824 = vmatprep.subr.bf16.mxu0 0
    %825 = vmatpush1.bf16.msra.mxu0 0
    %826 = vmatprep.subr.bf16.mxu0 0
    %827 = vmatpush1.bf16.msra.mxu0 0
    %828 = vmatprep.subr.bf16.mxu0 0
    %829 = vmatpush1.bf16.msra.mxu0 0
    %830 = vmatprep.subr.bf16.mxu0 0
    %831 = vmatpush1.bf16.msra.mxu0 0
    %832 = vmatprep.subr.bf16.mxu0 0
    %833 = vmatpush1.bf16.msra.mxu0 0
    %834 = vmatprep.subr.bf16.mxu0 0
    %835 = vmatpush1.bf16.msra.mxu0 0
    %836 = vmatprep.subr.bf16.mxu0 0
    %837 = vmatpush1.bf16.msra.mxu0 0
    %838 = vmatprep.subr.bf16.mxu0 0
    %839 = vmatpush1.bf16.msra.mxu0 0
    %840 = vmatprep.subr.bf16.mxu0 0
    %841 = vmatpush1.bf16.msra.mxu0 0
    %842 = vmatprep.subr.bf16.mxu0 0
    %843 = vmatpush1.bf16.msra.mxu0 0
    %844 = vmatprep.subr.bf16.mxu0 0
    %845 = vmatpush1.bf16.msra.mxu0 0
    %846 = vmatprep.subr.bf16.mxu0 0
    %847 = vmatpush1.bf16.msra.mxu0 0
    %848 = vmatprep.subr.bf16.mxu0 0
    %849 = vmatpush1.bf16.msra.mxu0 0
    %850 = vmatprep.subr.bf16.mxu0 0
    %851 = vmatpush1.bf16.msra.mxu0 0
    %852 = vmatprep.subr.bf16.mxu0 0
    %853 = vmatpush1.bf16.msra.mxu0 0
    %854 = vmatprep.mubr.bf16.mxu0 0
    %855 = vmatmul.mubr.bf16.gmra.mrb[0].mxu0 %v820
    %v856 = vpop.f32.mrb[0].mxu0
    %v857 = vadd.f32 0.0, %v856
    %v858 = vpop.f32.mrb[0].mxu0
    %v859 = vpop.f32.mrb[0].mxu0
    %v860 = vpop.f32.mrb[0].mxu0
    %861 = vdwg.mxu0
    %v862 = vpack.c.bf16 %v857, %v857
    %863 = vst [vmem:[#allocation2] sm:$0x1] %v862
    // Predicated region
    $region22: #{tpu_custom_call.1} parent=1 // pred_check
      _
    $region23: #{tpu_custom_call.1} parent=1 // pred_check_branch
      %865 = sbr.rel (0) target = $region25
    $region24: #{tpu_custom_call.1} parent=1 // pred_region
      %s867 = ssub.s32 16, 16
      %868 = vsyncadd [#allocation3], %s867
      %s870 = sshll.u32 [#allocation2], 4
      %s871 = int_to_ptr.vmem [resolvable:$true] %s870
      %873 = dma.vmem_to_hbm [thread:$0]  %s871, 16, %s5, [#allocation3]
    $region25: #{tpu_custom_call.1} parent=1 // pred_fallthru
      _
    // Predicated region
    $region26: #{tpu_custom_call.1} parent=1 // pred_check
      _
    $region27: #{tpu_custom_call.1} parent=1 // pred_check_branch
      %875 = sbr.rel (0) target = $region29
    $region28: #{tpu_custom_call.1} parent=1 // pred_region
      %876 = dma.done [#allocation3], 16
    $region29: #{tpu_custom_call.1} parent=1 // pred_fallthru
      _
    %877 = vsyncpa [#allocation3], 1

</llo_original>
